<compile_context>
chip_gen: v7x
topology: tpu7x:2x2x1
jax: 0.10.0
libtpu: 0.0.40
codegen_flags: <defaults>
</compile_context>

<pallas_src>
import functools
import math

import jax
import jax.numpy as jnp
from jax.experimental import pallas as pl
from jax.experimental.pallas import tpu as pltpu


def _make_pe(max_len: int, d_model: int, dtype=jnp.float32) -> jnp.ndarray:
    """Deterministic sinusoidal table, identical to the PyTorch __init__."""
    position = jnp.arange(max_len, dtype=jnp.float32)[:, None]                 # (L, 1)
    div_term = jnp.exp(
        jnp.arange(0, d_model, 2, dtype=jnp.float32) * (-math.log(10000.0) / d_model)
    )                                                                          # (D/2,)
    pe = jnp.zeros((max_len, d_model), dtype=jnp.float32)
    pe = pe.at[:, 0::2].set(jnp.sin(position * div_term))
    pe = pe.at[:, 1::2].set(jnp.cos(position * div_term))
    return pe[None].astype(dtype)                                              # (1, L, D)


def _add_pe(x, pe):
    """x: (TB, TW); pe: (P, TW) with P == 1 (broadcast) or P | TB (tile)."""
    if pe.shape[0] not in (1, x.shape[0]):
        reps = x.shape[0] // pe.shape[0]
        pe = jnp.concatenate([pe] * reps, axis=0)
    return x + pe          # (1, TW) broadcasts along sublanes automatically


def _pe_kernel_infer(x_ref, pe_ref, o_ref):
    o_ref[...] = _add_pe(x_ref[...], pe_ref[...]).astype(o_ref.dtype)


def _pe_kernel_train(seed_ref, x_ref, pe_ref, o_ref, *, dropout_p: float):
    y = _add_pe(x_ref[...], pe_ref[...])
    tb, tw = y.shape
    c = pl.program_id(0)     # column-tile index
    r = pl.program_id(1)     # row-tile index
    seed_u = seed_ref[0].astype(jnp.uint32)

    # Counter-based hash keyed on (global row, global col, seed).
    # Column contribution + a pre-mix round computed on a (1, TW) row only.
    col = jax.lax.broadcasted_iota(jnp.int32, (1, tw), 1) + c * tw
    ct = col.astype(jnp.uint32) * jnp.uint32(0x9E3779B1) + seed_u
    ct = ct ^ (ct >> 16)
    ct = ct * jnp.uint32(0x7FEB352D)
    # Row contribution on a (TB, 1) column only.
    row = jax.lax.broadcasted_iota(jnp.int32, (tb, 1), 0) + r * tb
    rt = row.astype(jnp.uint32) * jnp.uint32(0x85EBCA77)
    # Single full-width combine + one finalizer round.
    h = ct + rt
    h = h ^ (h >> 15)
    h = h * jnp.uint32(0x846CA68B)
    h = h ^ (h >> 16)

    # nn.Dropout: drop w.p. p, scale kept elements by 1/(1-p).
    thresh = jnp.uint32(min(int(round(dropout_p * 4294967296.0)), 0xFFFFFFFF))
    keep = h >= thresh
    scale = jnp.asarray(1.0 / (1.0 - dropout_p), dtype=y.dtype)
    y = jnp.where(keep, y * scale, jnp.zeros_like(y))
    o_ref[...] = y.astype(o_ref.dtype)


def _choose_row_factor(B: int, S: int, D: int, itemsize: int, min_rows: int,
                       max_tb: int) -> int:
    """Pick S1 | S so the (B*S1, (S/S1)*D) view fills sublanes + lanes well."""
    if B >= min_rows:
        return 1
    best, best_score = 1, None
    for s1 in range(1, S + 1):
        if S % s1:
            continue
        rows = B * s1
        if rows > max_tb:
            continue
        cols = (S // s1) * D
        row_fill = rows / (((rows + min_rows - 1) // min_rows) * min_rows)
        lane_fill = 1.0 if cols >= 128 else cols / 128.0
        score = (row_fill * lane_fill, cols)   # tie-break: prefer lane-dense (wide) cols
        if best_score is None or score > best_score:
            best_score, best = score, s1
    return best


def positional_encoding(x, pe, *, dropout_p: float = 0.1,
                        training: bool = False, seed: int = 0):
    """x: (B, S, D); pe: (1, max_len, D). Returns dropout(x + pe[:, :S])."""
    B, S, D = x.shape
    assert pe.shape[0] == 1 and pe.shape[2] == D and pe.shape[1] >= S
    assert 0.0 <= dropout_p < 1.0

    itemsize = jnp.dtype(x.dtype).itemsize
    MAX_TB = 512
    min_rows = max(8, 32 // max(1, itemsize))   # sublanes per vreg: 8 f32, 16 bf16

    # ---- layout: (B*S1, S2*D) view so sublanes are filled even for tiny B ----
    S1 = _choose_row_factor(B, S, D, itemsize, min_rows, MAX_TB)
    S2 = S // S1
    R = B * S1                                  # rows of the 2-D view
    C = S2 * D                                  # cols of the 2-D view

    x2 = x.reshape(R, C)                                    # free reshape
    pe2 = pe[:, :S, :].reshape(S1, C).astype(x.dtype)       # column-indexed PE view

    # ---- generation-aware VMEM / block-size budget ----
    try:
        phys_vmem = int(pltpu.get_tpu_info().vmem_capacity_bytes)
    except Exception:
        phys_vmem = 64 * 1024 * 1024            # conservative (v7x-safe) default
    if phys_vmem >= 100 * 1024 * 1024:          # v5e / v6e: 128 MiB physical
        vmem_limit = 64 * 1024 * 1024
        blk_target = 8 * 1024 * 1024
    else:                                       # v7x: 64 MiB physical
        vmem_limit = 32 * 1024 * 1024
        blk_target = 4 * 1024 * 1024

    # ---- tile sizes ----
    TB = R if R <= MAX_TB else MAX_TB           # full rows, or 512 (multiple of 8)
    target_cols = max(128, blk_target // max(1, TB * itemsize))
    if C >= 128:
        TW = max(128, (min(C, target_cols) // 128) * 128)   # lane-dense, multiple of 128
    else:
        TW = C                                               # full (small) last dim
    n_row_tiles = pl.cdiv(R, TB)
    # Ensure both v7x TensorCores get grid iterations when rows give only 1 tile.
    if n_row_tiles == 1 and C >= 2 * 128 and TW > 128:
        want_tiles = 8 if C >= 8 * 128 else 2
        cap = max(128, ((C // want_tiles) // 128) * 128)
        TW = min(TW, cap)
    n_col_tiles = pl.cdiv(C, TW)

    # Rows vary fastest (last grid axis) -> the PE column block stays resident
    # across all row tiles of a column.
    grid = (n_col_tiles, n_row_tiles)

    compiler_params = pltpu.CompilerParams(
        dimension_semantics=("parallel", "parallel"),
        vmem_limit_bytes=vmem_limit,
    )
    out_shape = jax.ShapeDtypeStruct((R, C), x.dtype)

    if training and dropout_p > 0.0:
        kernel = functools.partial(_pe_kernel_train, dropout_p=float(dropout_p))
        seed_arr = jnp.asarray([seed], dtype=jnp.int32)
        out2 = pl.pallas_call(
            kernel,
            out_shape=out_shape,
            grid_spec=pltpu.PrefetchScalarGridSpec(
                num_scalar_prefetch=1,                       # seed lives in SMEM
                grid=grid,
                in_specs=[
                    pl.BlockSpec((TB, TW), lambda c, r, seed: (r, c)),   # x
                    pl.BlockSpec((S1, TW), lambda c, r, seed: (0, c)),   # pe (col only)
                ],
                out_specs=pl.BlockSpec((TB, TW), lambda c, r, seed: (r, c)),
            ),
            compiler_params=compiler_params,
        )(seed_arr, x2, pe2)
    else:
        # Inference hot path: no scalar-prefetch DMA, no seed argument.
        out2 = pl.pallas_call(
            _pe_kernel_infer,
            out_shape=out_shape,
            grid_spec=pl.GridSpec(
                grid=grid,
                in_specs=[
                    pl.BlockSpec((TB, TW), lambda c, r: (r, c)),         # x
                    pl.BlockSpec((S1, TW), lambda c, r: (0, c)),         # pe (col only)
                ],
                out_specs=pl.BlockSpec((TB, TW), lambda c, r: (r, c)),
            ),
            compiler_params=compiler_params,
        )(x2, pe2)

    return out2.reshape(B, S, D)


if __name__ == "__main__":
    d_model = 32
    max_len = 200
    key = jax.random.PRNGKey(0)
    k1, k2 = jax.random.split(key)

    pe = _make_pe(max_len, d_model, dtype=jnp.float32)

    # Small-batch case (exercises the sublane-fill reshape path).
    batch, seq = 2, 8
    x = jax.random.normal(k1, (batch, seq, d_model), dtype=jnp.float32)
    out = jax.block_until_ready(positional_encoding(x, pe, dropout_p=0.1, training=False))
    ref = x + pe[:, :seq]
    assert out.shape == x.shape and out.dtype == x.dtype
    assert jnp.allclose(out, ref, atol=1e-6, rtol=1e-6)

    # Larger-batch case (exercises the plain (B, S*D) path).
    xb = jax.random.normal(k2, (16, seq, d_model), dtype=jnp.float32)
    outb = jax.block_until_ready(positional_encoding(xb, pe, dropout_p=0.1, training=False))
    refb = xb + pe[:, :seq]
    assert jnp.allclose(outb, refb, atol=1e-6, rtol=1e-6)

    # Training-mode forward: each element is either ~0 (dropped) or ref/(1-p).
    # TODO(synk): dropout mask uses a counter-based hash, not PyTorch's RNG stream
    # (same Bernoulli(p) + 1/(1-p) scaling semantics, different random bits).
    p = 0.1
    out_t = jax.block_until_ready(
        positional_encoding(x, pe, dropout_p=p, training=True, seed=1234)
    )
    assert out_t.shape == x.shape and out_t.dtype == x.dtype
    scaled = ref / (1.0 - p)
    tol = 1e-4
    is_drop = jnp.abs(out_t) < tol
    is_keep = jnp.abs(out_t - scaled) < tol
    assert bool(jnp.all(is_drop | is_keep))
    keep_frac = float(jnp.mean(is_keep.astype(jnp.float32)))
    assert 0.5 < keep_frac <= 1.0   # loose sanity check for p = 0.1

    print("KERNEL_OK")
</pallas_src>

<mosaic_0001>
module attributes {stable_mosaic.version = 11 : i64} {
  func.func @_pe_kernel_infer(%arg0: i32, %arg1: i32, %arg2: memref<4x128xf32, #tpu.memory_space<vmem>>, %arg3: memref<2x128xf32, #tpu.memory_space<vmem>>, %arg4: memref<4x128xf32, #tpu.memory_space<vmem>>) attributes {dimension_semantics = [#tpu.dimension_semantics<parallel>, #tpu.dimension_semantics<parallel>], iteration_bounds = array<i64: 1, 1>, scalar_prefetch = 0 : i64, scratch_operands = 0 : i64, tpu.core_type = #tpu.core_type<tc>, window_params = [{transform_indices = @transform_0, window_bounds = array<i64: 4, 128>}, {transform_indices = @transform_1, window_bounds = array<i64: 2, 128>}, {transform_indices = @transform_2, window_bounds = array<i64: 4, 128>}]} {
    %c0 = arith.constant 0 : index
    %c0_0 = arith.constant 0 : index
    %0 = vector.load %arg2[%c0, %c0_0] : memref<4x128xf32, #tpu.memory_space<vmem>>, vector<4x128xf32>
    %c0_1 = arith.constant 0 : index
    %c0_2 = arith.constant 0 : index
    %1 = vector.load %arg3[%c0_1, %c0_2] : memref<2x128xf32, #tpu.memory_space<vmem>>, vector<2x128xf32>
    %2 = tpu.concatenate %1, %1 in 0 : vector<2x128xf32>, vector<2x128xf32> -> vector<4x128xf32>
    %3 = arith.addf %0, %2 : vector<4x128xf32>
    %c0_3 = arith.constant 0 : index
    %c0_4 = arith.constant 0 : index
    %4 = vector.load %arg4[%c0_3, %c0_4] : memref<4x128xf32, #tpu.memory_space<vmem>>, vector<4x128xf32>
    tpu.vector_store %arg4[%c0_3, %c0_4], %3 {strides = array<i32>} : memref<4x128xf32, #tpu.memory_space<vmem>>, vector<4x128xf32>,
    return
  }
  func.func @transform_0(%arg0: i32, %arg1: i32) -> (i32, i32) {
    %c0_i32 = arith.constant 0 : i32
    return %arg1, %arg0 : i32, i32
  }
  func.func @transform_1(%arg0: i32, %arg1: i32) -> (i32, i32) {
    %c0_i32 = arith.constant 0 : i32
    %c0_i32_0 = arith.constant 0 : i32
    return %c0_i32, %arg0 : i32, i32
  }
  func.func @transform_2(%arg0: i32, %arg1: i32) -> (i32, i32) {
    %c0_i32 = arith.constant 0 : i32
    return %arg1, %arg0 : i32, i32
  }
}

</mosaic_0001>

<llo_original>
// kernel: tpu_custom_call.1
$region0: #{tpu_custom_call.1}
  #allocation0 [shape = 'u32[]', space=smem, size = 0x4, offset = 0x4, fixed_abs, tag = 'smem constant byte address 0x4 - core index']
  #allocation1 [shape = 'u32[144,128]{1,0:T(1,128)}', space=vmem, size = 0x12000, scoped, tag = 'internal scratch']
  %s0 = inlined_call_operand.hbm [shape: f32[4,128], index: 0, kind: input, shape index: {}]
  %s1 = inlined_call_operand.vmem [shape: f32[2,128], index: 1, kind: input, shape index: {}]
  %s2 = inlined_call_operand.hbm [shape: f32[4,128], index: 2, kind: output, shape index: {}]
  %s3 = sld [smem:[#allocation0]]
  $region22: #{tpu_custom_call.1} parent=0
    _
  %s5 = ssub.s32 1, %s3
  %s6 = scalar_select 0, %s5, %s3
  $region1: #{tpu_custom_call.1} parent=0
    #allocation2 [shape = 'u8[2048]{0}', space=vmem, size = 0x800, scoped, tag = 'input window, operand 0, single buffered']
    #allocation3 [shape = 's32[1]{0}', space=sflag, size = 0x4, scoped, tag = 'scoped memory for tpu_custom_call.1']
    #allocation4 [shape = 's32[1]{0}', space=sflag, size = 0x4, scoped, tag = 'scoped memory for tpu_custom_call.1']
    #allocation5 [shape = 'u8[2048]{0}', space=vmem, size = 0x800, scoped, tag = 'output window, operand 0, single buffered']
    %7 = vsyncpa [#allocation3], 0
    %8 = vsyncpa [#allocation4], 0
    // Predicated region
    $region2: #{tpu_custom_call.1} parent=1 // pred_check
      _
    $region3: #{tpu_custom_call.1} parent=1 // pred_check_branch
      %10 = sbr.rel (0) target = $region5
    $region4: #{tpu_custom_call.1} parent=1 // pred_region
      %s12 = ssub.s32 64, 64
      %13 = vsyncadd [#allocation3], %s12
      %s15 = sshll.u32 [#allocation2], 4
      %s16 = int_to_ptr.vmem [resolvable:$true] %s15
      %18 = dma.hbm_to_vmem [thread:$0]  %s0, 64, %s16, [#allocation3]
    $region5: #{tpu_custom_call.1} parent=1 // pred_fallthru
      _
    // Predicated region
    $region6: #{tpu_custom_call.1} parent=1 // pred_check
      _
    $region7: #{tpu_custom_call.1} parent=1 // pred_check_branch
      %20 = sbr.rel (0) target = $region9
    $region8: #{tpu_custom_call.1} parent=1 // pred_region
      _
    $region9: #{tpu_custom_call.1} parent=1 // pred_fallthru
      _
    // Predicated region
    $region10: #{tpu_custom_call.1} parent=1 // pred_check
      _
    $region11: #{tpu_custom_call.1} parent=1 // pred_check_branch
      %22 = sbr.rel (0) target = $region13
    $region12: #{tpu_custom_call.1} parent=1 // pred_region
      %23 = dma.done [#allocation3], 64
    $region13: #{tpu_custom_call.1} parent=1 // pred_fallthru
      _
    %v24 = vld [vmem:[#allocation2] sm:$0xf]
    %v25 = vld [vmem:[%s1] sm:$0x3]
    %v27 = vrot.slane %v25, 6
    %vm29 = vcmask 1041408
    %v30 = vsel %vm29, %v25, %v27
    %v31 = vadd.f32 %v24, %v30
    %32 = vst [vmem:[#allocation5] sm:$0xf] %v31
    // Predicated region
    $region14: #{tpu_custom_call.1} parent=1 // pred_check
      _
    $region15: #{tpu_custom_call.1} parent=1 // pred_check_branch
      %34 = sbr.rel (0) target = $region17
    $region16: #{tpu_custom_call.1} parent=1 // pred_region
      %s36 = ssub.s32 64, 64
      %37 = vsyncadd [#allocation4], %s36
      %s39 = sshll.u32 [#allocation5], 4
      %s40 = int_to_ptr.vmem [resolvable:$true] %s39
      %42 = dma.vmem_to_hbm [thread:$0]  %s40, 64, %s2, [#allocation4]
    $region17: #{tpu_custom_call.1} parent=1 // pred_fallthru
      _
    // Predicated region
    $region18: #{tpu_custom_call.1} parent=1 // pred_check
      _
    $region19: #{tpu_custom_call.1} parent=1 // pred_check_branch
      %44 = sbr.rel (0) target = $region21
    $region20: #{tpu_custom_call.1} parent=1 // pred_region
      %45 = dma.done [#allocation4], 64
    $region21: #{tpu_custom_call.1} parent=1 // pred_fallthru
      _
    %46 = vsyncpa [#allocation3], 1
    %47 = vsyncpa [#allocation4], 1

</llo_original>
